<compile_context>
chip_gen: v7x
topology: tpu7x:2x2x1
jax: 0.10.0
libtpu: 0.0.40
codegen_flags: <defaults>
</compile_context>

<pallas_src>
import functools

import jax
import jax.numpy as jnp
from jax.experimental import pallas as pl
from jax.experimental.pallas import tpu as pltpu

LANE = 128
_VMEM_LIMIT_BYTES = 48 * 1024 * 1024   # raised scoped limit; safe on v5e/v6e/v7x
_VMEM_BUDGET_BYTES = 36 * 1024 * 1024  # working-set target used to pick TILE_N


def _round_up(x, m):
    return ((x + m - 1) // m) * m


def _pick_tile_n(n_pad):
    """Largest row tile whose double-buffered working set fits the VMEM budget."""
    for cand in (512, 256, 128, 64, 32, 16, 8):
        if cand > n_pad:
            continue
        need = 2 * (
            cand * n_pad * 2       # A_hat row slab (bf16), double buffered
            + n_pad * LANE * 2     # resident dense operand X / H (bf16)
            + LANE * LANE * 2      # weight tile (bf16)
            + LANE * 4             # bias row (f32)
            + cand * LANE * 4      # output block (f32 worst case)
        )
        if need <= _VMEM_BUDGET_BYTES:
            return cand
    return 8


# ---------------------------------------------------------------------------
# Kernels
# ---------------------------------------------------------------------------
def gcn_layer1_kernel(a_ref, x_ref, w_ref, b_ref, h_ref):
    """H_blk = relu((A_blk @ X) @ W1 + b1) for one (TILE_N, N) row slab."""
    ax = jnp.dot(a_ref[...], x_ref[...], preferred_element_type=jnp.float32)
    h = jnp.dot(ax.astype(jnp.bfloat16), w_ref[...],
                preferred_element_type=jnp.float32) + b_ref[...]
    h_ref[...] = jnp.maximum(h, 0.0).astype(h_ref.dtype)


def gcn_layer2_kernel(a_ref, h_ref, w_ref, b_ref, out_ref, *, num_classes):
    """out_blk = log_softmax((A_blk @ H) @ W2 + b2) over the real classes."""
    ah = jnp.dot(a_ref[...], h_ref[...], preferred_element_type=jnp.float32)
    z = jnp.dot(ah.astype(jnp.bfloat16), w_ref[...],
                preferred_element_type=jnp.float32) + b_ref[...]
    # Mask padded class lanes before the row-wise log-softmax.
    cols = jax.lax.broadcasted_iota(jnp.int32, z.shape, 1)
    valid = cols < num_classes
    z = jnp.where(valid, z, -jnp.inf)
    m = jnp.max(z, axis=1, keepdims=True)
    s = z - m                                    # padded lanes -> -inf
    lse = jnp.log(jnp.sum(jnp.exp(s), axis=1, keepdims=True))
    out_ref[...] = jnp.where(valid, s - lse, 0.0)


# ---------------------------------------------------------------------------
# Graph preprocessing (plain JAX glue)
# ---------------------------------------------------------------------------
def build_norm_adj(edge_index, num_nodes):
    """Dense normalized adjacency with self loops: D^-1/2 (A + I) D^-1/2.

    Messages flow src -> dst (aggregated at dst). Duplicate edges accumulate
    (scatter-add), matching PyG's scatter semantics for multigraph inputs.
    """
    src = edge_index[0]
    dst = edge_index[1]
    a = jnp.zeros((num_nodes, num_nodes), jnp.float32)
    a = a.at[dst, src].add(1.0)
    a = a + jnp.eye(num_nodes, dtype=jnp.float32)  # self loops
    deg = jnp.sum(a, axis=1)
    d_inv_sqrt = jnp.where(deg > 0, 1.0 / jnp.sqrt(deg), 0.0)
    return d_inv_sqrt[:, None] * a * d_inv_sqrt[None, :]


# ---------------------------------------------------------------------------
# Forward wrapper
# ---------------------------------------------------------------------------
def gcn_forward(x, edge_index, params):
    n, f = x.shape
    w1, b1, w2, b2 = params
    h_dim = w1.shape[1]
    c_dim = w2.shape[1]

    a_hat = build_norm_adj(edge_index, n)

    # ---- pad to TPU-friendly shapes (sublane mult of tile, lanes mult of 128)
    n8 = _round_up(n, 8)
    tile_n = _pick_tile_n(n8)
    n_pad = _round_up(n8, tile_n)
    f_pad = _round_up(f, LANE)
    h_pad = _round_up(h_dim, LANE)
    c_pad = _round_up(c_dim, LANE)

    a_p = jnp.zeros((n_pad, n_pad), jnp.bfloat16).at[:n, :n].set(
        a_hat.astype(jnp.bfloat16))
    x_p = jnp.zeros((n_pad, f_pad), jnp.bfloat16).at[:n, :f].set(
        x.astype(jnp.bfloat16))
    w1_p = jnp.zeros((f_pad, h_pad), jnp.bfloat16).at[:f, :h_dim].set(
        w1.astype(jnp.bfloat16))
    b1_p = jnp.zeros((1, h_pad), jnp.float32).at[:, :h_dim].set(b1)
    w2_p = jnp.zeros((h_pad, c_pad), jnp.bfloat16).at[:h_dim, :c_dim].set(
        w2.astype(jnp.bfloat16))
    b2_p = jnp.zeros((1, c_pad), jnp.float32).at[:, :c_dim].set(b2)

    grid = (n_pad // tile_n,)
    compiler_params = pltpu.CompilerParams(
        dimension_semantics=("parallel",),      # independent row blocks
        vmem_limit_bytes=_VMEM_LIMIT_BYTES,
    )

    # ---- layer 1: H = relu(A_hat @ X @ W1 + b1) ----
    cost1 = pl.CostEstimate(
        flops=2 * (n_pad * n_pad * f_pad + n_pad * f_pad * h_pad),
        transcendentals=0,
        bytes_accessed=(n_pad * n_pad * 2 + n_pad * f_pad * 2
                        + f_pad * h_pad * 2 + h_pad * 4 + n_pad * h_pad * 2),
    )
    h_out = pl.pallas_call(
        gcn_layer1_kernel,
        out_shape=jax.ShapeDtypeStruct((n_pad, h_pad), jnp.bfloat16),
        grid_spec=pltpu.PrefetchScalarGridSpec(
            num_scalar_prefetch=0,
            grid=grid,
            in_specs=[
                pl.BlockSpec((tile_n, n_pad), lambda i: (i, 0)),   # A row slab
                pl.BlockSpec((n_pad, f_pad), lambda i: (0, 0)),    # X (resident)
                pl.BlockSpec((f_pad, h_pad), lambda i: (0, 0)),    # W1
                pl.BlockSpec((1, h_pad), lambda i: (0, 0)),        # b1
            ],
            out_specs=pl.BlockSpec((tile_n, h_pad), lambda i: (i, 0)),
        ),
        compiler_params=compiler_params,
        cost_estimate=cost1,
    )(a_p, x_p, w1_p, b1_p)

    # ---- dropout: identity (eval mode) ----

    # ---- layer 2: out = log_softmax(A_hat @ H @ W2 + b2, axis=1) ----
    cost2 = pl.CostEstimate(
        flops=2 * (n_pad * n_pad * h_pad + n_pad * h_pad * c_pad),
        transcendentals=n_pad * c_pad + n_pad,
        bytes_accessed=(n_pad * n_pad * 2 + n_pad * h_pad * 2
                        + h_pad * c_pad * 2 + c_pad * 4 + n_pad * c_pad * 4),
    )
    out_p = pl.pallas_call(
        functools.partial(gcn_layer2_kernel, num_classes=c_dim),
        out_shape=jax.ShapeDtypeStruct((n_pad, c_pad), jnp.float32),
        grid_spec=pltpu.PrefetchScalarGridSpec(
            num_scalar_prefetch=0,
            grid=grid,
            in_specs=[
                pl.BlockSpec((tile_n, n_pad), lambda i: (i, 0)),   # A row slab
                pl.BlockSpec((n_pad, h_pad), lambda i: (0, 0)),    # H (resident)
                pl.BlockSpec((h_pad, c_pad), lambda i: (0, 0)),    # W2
                pl.BlockSpec((1, c_pad), lambda i: (0, 0)),        # b2
            ],
            out_specs=pl.BlockSpec((tile_n, c_pad), lambda i: (i, 0)),
        ),
        compiler_params=compiler_params,
        cost_estimate=cost2,
    )(a_p, h_out, w2_p, b2_p)

    return out_p[:n, :c_dim]


# ---------------------------------------------------------------------------
# Params / reference
# ---------------------------------------------------------------------------
def init_params(key, num_node_features, hidden, num_classes):
    k1, k2 = jax.random.split(key)

    def glorot(k, fan_in, fan_out):
        lim = jnp.sqrt(6.0 / (fan_in + fan_out))
        return jax.random.uniform(k, (fan_in, fan_out), jnp.float32, -lim, lim)

    w1 = glorot(k1, num_node_features, hidden)
    b1 = jnp.zeros((1, hidden), jnp.float32)
    w2 = glorot(k2, hidden, num_classes)
    b2 = jnp.zeros((1, num_classes), jnp.float32)
    return (w1, b1, w2, b2)


def gcn_reference(x, edge_index, params):
    w1, b1, w2, b2 = params
    a_hat = build_norm_adj(edge_index, x.shape[0])
    h = jnp.maximum(a_hat @ (x @ w1) + b1, 0.0)
    z = a_hat @ (h @ w2) + b2
    return jax.nn.log_softmax(z, axis=1)


if __name__ == "__main__":
    key = jax.random.PRNGKey(0)
    kx, kp = jax.random.split(key)

    num_nodes = 16
    num_node_features = 4   # banknote dataset has 4 features
    hidden = 16
    num_classes = 2

    # node features
    x = jax.random.normal(kx, (num_nodes, num_node_features), jnp.float32)

    # simple undirected ring graph as edge_index [2, E] (both directions)
    idx = jnp.arange(num_nodes)
    src = jnp.concatenate([idx, (idx + 1) % num_nodes])
    dst = jnp.concatenate([(idx + 1) % num_nodes, idx])
    edge_index = jnp.stack([src, dst], axis=0).astype(jnp.int32)

    params = init_params(kp, num_node_features, hidden, num_classes)

    out = gcn_forward(x, edge_index, params)
    out = jax.block_until_ready(out)

    assert out.shape == (num_nodes, num_classes)
    # rows of log_softmax must exp-sum to 1
    assert jnp.allclose(jnp.sum(jnp.exp(out), axis=1), 1.0, atol=1e-4)
    # match a pure-JAX f32 reference (bf16 streamed operands -> loose tolerance)
    ref = gcn_reference(x, edge_index, params)
    assert jnp.allclose(out, ref, atol=1e-1), float(jnp.max(jnp.abs(out - ref)))
    print("KERNEL_OK")
</pallas_src>

<mosaic_0001>
module attributes {stable_mosaic.version = 11 : i64} {
  func.func @gcn_layer1_kernel(%arg0: i32, %arg1: memref<16x16xbf16, #tpu.memory_space<vmem>>, %arg2: memref<16x128xbf16, #tpu.memory_space<vmem>>, %arg3: memref<128x128xbf16, #tpu.memory_space<vmem>>, %arg4: memref<1x128xf32, #tpu.memory_space<vmem>>, %arg5: memref<16x128xbf16, #tpu.memory_space<vmem>>) attributes {dimension_semantics = [#tpu.dimension_semantics<parallel>], iteration_bounds = array<i64: 1>, scalar_prefetch = 0 : i64, scratch_operands = 0 : i64, tpu.core_type = #tpu.core_type<tc>, window_params = [{transform_indices = @transform_0, window_bounds = array<i64: 16, 16>}, {pipeline_mode = #tpu.pipeline_mode<synchronous>, transform_indices = @transform_1, window_bounds = array<i64: 16, 128>}, {pipeline_mode = #tpu.pipeline_mode<synchronous>, transform_indices = @transform_2, window_bounds = array<i64: 128, 128>}, {pipeline_mode = #tpu.pipeline_mode<synchronous>, transform_indices = @transform_3, window_bounds = array<i64: 1, 128>}, {transform_indices = @transform_4, window_bounds = array<i64: 16, 128>}]} {
    %c0 = arith.constant 0 : index
    %c0_0 = arith.constant 0 : index
    %0 = vector.load %arg1[%c0, %c0_0] : memref<16x16xbf16, #tpu.memory_space<vmem>>, vector<16x16xbf16>
    %c0_1 = arith.constant 0 : index
    %c0_2 = arith.constant 0 : index
    %1 = vector.load %arg2[%c0_1, %c0_2] : memref<16x128xbf16, #tpu.memory_space<vmem>>, vector<16x128xbf16>
    %cst = arith.constant dense<0.000000e+00> : vector<16x128xf32>
    %2 = tpu.matmul %0, %1, %cst {dimension_numbers = #tpu.dot_dimension_numbers<[1], [0], [0], [1], [0, 0, 1, 1], [], []>} : vector<16x16xbf16>, vector<16x128xbf16>, vector<16x128xf32> -> vector<16x128xf32>
    %3 = arith.truncf %2 : vector<16x128xf32> to vector<16x128xbf16>
    %c0_3 = arith.constant 0 : index
    %c0_4 = arith.constant 0 : index
    %4 = vector.load %arg3[%c0_3, %c0_4] : memref<128x128xbf16, #tpu.memory_space<vmem>>, vector<128x128xbf16>
    %cst_5 = arith.constant dense<0.000000e+00> : vector<16x128xf32>
    %5 = tpu.matmul %3, %4, %cst_5 {dimension_numbers = #tpu.dot_dimension_numbers<[1], [0], [0], [1], [0, 0, 1, 1], [], []>} : vector<16x128xbf16>, vector<128x128xbf16>, vector<16x128xf32> -> vector<16x128xf32>
    %c0_6 = arith.constant 0 : index
    %c0_7 = arith.constant 0 : index
    %6 = vector.load %arg4[%c0_6, %c0_7] : memref<1x128xf32, #tpu.memory_space<vmem>>, vector<1x128xf32>
    %7 = vector.broadcast %6 : vector<1x128xf32> to vector<16x128xf32>
    %8 = arith.addf %5, %7 : vector<16x128xf32>
    %cst_8 = arith.constant 0.000000e+00 : f32
    %9 = vector.broadcast %cst_8 : f32 to vector<16x128xf32>
    %10 = arith.maximumf %8, %9 : vector<16x128xf32>
    %11 = arith.truncf %10 : vector<16x128xf32> to vector<16x128xbf16>
    %c0_9 = arith.constant 0 : index
    %c0_10 = arith.constant 0 : index
    %12 = vector.load %arg5[%c0_9, %c0_10] : memref<16x128xbf16, #tpu.memory_space<vmem>>, vector<16x128xbf16>
    tpu.vector_store %arg5[%c0_9, %c0_10], %11 {strides = array<i32>} : memref<16x128xbf16, #tpu.memory_space<vmem>>, vector<16x128xbf16>,
    return
  }
  func.func @transform_0(%arg0: i32) -> (i32, i32) {
    %c0_i32 = arith.constant 0 : i32
    %c0_i32_0 = arith.constant 0 : i32
    return %arg0, %c0_i32 : i32, i32
  }
  func.func @transform_1(%arg0: i32) -> (i32, i32) {
    %c0_i32 = arith.constant 0 : i32
    %c0_i32_0 = arith.constant 0 : i32
    %c0_i32_1 = arith.constant 0 : i32
    return %c0_i32, %c0_i32_0 : i32, i32
  }
  func.func @transform_2(%arg0: i32) -> (i32, i32) {
    %c0_i32 = arith.constant 0 : i32
    %c0_i32_0 = arith.constant 0 : i32
    %c0_i32_1 = arith.constant 0 : i32
    return %c0_i32, %c0_i32_0 : i32, i32
  }
  func.func @transform_3(%arg0: i32) -> (i32, i32) {
    %c0_i32 = arith.constant 0 : i32
    %c0_i32_0 = arith.constant 0 : i32
    %c0_i32_1 = arith.constant 0 : i32
    return %c0_i32, %c0_i32_0 : i32, i32
  }
  func.func @transform_4(%arg0: i32) -> (i32, i32) {
    %c0_i32 = arith.constant 0 : i32
    %c0_i32_0 = arith.constant 0 : i32
    return %arg0, %c0_i32 : i32, i32
  }
}

</mosaic_0001>

<llo_original>
// kernel: tpu_custom_call.1
$region0: #{tpu_custom_call.1}
  #allocation0 [shape = 'u32[]', space=smem, size = 0x4, offset = 0x4, fixed_abs, tag = 'smem constant byte address 0x4 - core index']
  #allocation1 [shape = 'u32[144,128]{1,0:T(1,128)}', space=vmem, size = 0x12000, scoped, tag = 'internal scratch']
  %s0 = inlined_call_operand.hbm [shape: bf16[16,16], index: 0, kind: input, shape index: {}]
  %s1 = inlined_call_operand.hbm [shape: bf16[16,128], index: 1, kind: input, shape index: {}]
  %s2 = inlined_call_operand.hbm [shape: bf16[128,128], index: 2, kind: input, shape index: {}]
  %s3 = inlined_call_operand.vmem [shape: f32[1,128], index: 3, kind: input, shape index: {}]
  %s4 = inlined_call_operand.hbm [shape: bf16[16,128], index: 4, kind: output, shape index: {}]
  %s5 = sld [smem:[#allocation0]]
  $region38: #{tpu_custom_call.1} parent=0
    _
  %s7 = ssub.s32 1, %s5
  %s8 = scalar_select 0, %s7, %s5
  $region1: #{tpu_custom_call.1} parent=0
    #allocation2 [shape = 'u8[4096]{0}', space=vmem, size = 0x1000, scoped, tag = 'input window, operand 0, single buffered']
    #allocation3 [shape = 's32[1]{0}', space=sflag, size = 0x4, scoped, tag = 'scoped memory for tpu_custom_call.1']
    #allocation4 [shape = 's32[1]{0}', space=sflag, size = 0x4, scoped, tag = 'scoped memory for tpu_custom_call.1']
    #allocation5 [shape = 'u8[4096]{0}', space=vmem, size = 0x1000, scoped, tag = 'input window, operand 1, single buffered']
    #allocation6 [shape = 's32[1]{0}', space=sflag, size = 0x4, scoped, tag = 'scoped memory for tpu_custom_call.1']
    #allocation7 [shape = 'u8[32768]{0}', space=vmem, size = 0x8000, scoped, tag = 'input window, operand 2, single buffered']
    #allocation8 [shape = 'u8[4096]{0}', space=vmem, size = 0x1000, scoped, tag = 'output window, operand 0, single buffered']
    %9 = vsyncpa [#allocation3], 0
    %10 = vsyncpa [#allocation6], 0
    %11 = vsyncpa [#allocation4], 0
    // Predicated region
    $region2: #{tpu_custom_call.1} parent=1 // pred_check
      _
    $region3: #{tpu_custom_call.1} parent=1 // pred_check_branch
      %13 = sbr.rel (0) target = $region5
    $region4: #{tpu_custom_call.1} parent=1 // pred_region
      %s15 = ssub.s32 128, 128
      %16 = vsyncadd [#allocation3], %s15
      %s17 = sshll.u32 [#allocation2], 4
      %s18 = int_to_ptr.vmem [resolvable:$true] %s17
      %23 = dma.hbm_to_vmem [thread:$0]  %s0, 128, %s18, [#allocation3], 64, 64, 4
    $region5: #{tpu_custom_call.1} parent=1 // pred_fallthru
      _
    // Predicated region
    $region6: #{tpu_custom_call.1} parent=1 // pred_check
      _
    $region7: #{tpu_custom_call.1} parent=1 // pred_check_branch
      %25 = sbr.rel (0) target = $region9
    $region8: #{tpu_custom_call.1} parent=1 // pred_region
      %s27 = ssub.s32 128, 128
      %28 = vsyncadd [#allocation6], %s27
      %s29 = sshll.u32 [#allocation5], 4
      %s30 = int_to_ptr.vmem [resolvable:$true] %s29
      %35 = dma.hbm_to_vmem [thread:$0]  %s1, 128, %s30, [#allocation6], 64, 64, 4
    $region9: #{tpu_custom_call.1} parent=1 // pred_fallthru
      _
    // Predicated region
    $region10: #{tpu_custom_call.1} parent=1 // pred_check
      _
    $region11: #{tpu_custom_call.1} parent=1 // pred_check_branch
      %37 = sbr.rel (0) target = $region13
    $region12: #{tpu_custom_call.1} parent=1 // pred_region
      %s39 = ssub.s32 1024, 1024
      %40 = vsyncadd [#allocation6], %s39
      %s41 = sshll.u32 [#allocation7], 4
      %s42 = int_to_ptr.vmem [resolvable:$true] %s41
      %47 = dma.hbm_to_vmem [thread:$0]  %s2, 1024, %s42, [#allocation6], 64, 64, 4
    $region13: #{tpu_custom_call.1} parent=1 // pred_fallthru
      _
    // Predicated region
    $region14: #{tpu_custom_call.1} parent=1 // pred_check
      _
    $region15: #{tpu_custom_call.1} parent=1 // pred_check_branch
      %49 = sbr.rel (0) target = $region17
    $region16: #{tpu_custom_call.1} parent=1 // pred_region
      _
    $region17: #{tpu_custom_call.1} parent=1 // pred_fallthru
      _
    // Predicated region
    $region18: #{tpu_custom_call.1} parent=1 // pred_check
      _
    $region19: #{tpu_custom_call.1} parent=1 // pred_check_branch
      %51 = sbr.rel (0) target = $region21
    $region20: #{tpu_custom_call.1} parent=1 // pred_region
      %52 = dma.done [#allocation3], 128
    $region21: #{tpu_custom_call.1} parent=1 // pred_fallthru
      _
    // Predicated region
    $region22: #{tpu_custom_call.1} parent=1 // pred_check
      _
    $region23: #{tpu_custom_call.1} parent=1 // pred_check_branch
      %54 = sbr.rel (0) target = $region25
    $region24: #{tpu_custom_call.1} parent=1 // pred_region
      %55 = dma.done [#allocation6], 128
    $region25: #{tpu_custom_call.1} parent=1 // pred_fallthru
      _
    // Predicated region
    $region26: #{tpu_custom_call.1} parent=1 // pred_check
      _
    $region27: #{tpu_custom_call.1} parent=1 // pred_check_branch
      %57 = sbr.rel (0) target = $region29
    $region28: #{tpu_custom_call.1} parent=1 // pred_region
      %58 = dma.done [#allocation6], 1024
    $region29: #{tpu_custom_call.1} parent=1 // pred_fallthru
      _
    %v60 = vld [vmem:[#allocation2] sm:$0xf]
    %v61 = vld [vmem:[#allocation2 + $0x4] sm:$0xf]
    %v62 = vld [vmem:[#allocation5] sm:$0xf]
    %v63 = vld [vmem:[#allocation5 + $0x4] sm:$0xf]
    %v66 = vunpack.c.l.b16 %v60
    %v67 = vunpack.c.l.b16 %v61
    %v68 = vpack.c.b16 %v67, %v66
    %v71 = vunpack.c.l.b16 %v62
    %v72 = vunpack.c.l.b16 %v63
    %v73 = vpack.c.b16 %v72, %v71
    %vm75 = vcmask 130048
    %v77 = vsel %vm75, %v68, 0
    %79 = vmatprep.subr.bf16.mxu0 0
    %80 = vmatpush1.bf16.msra.mxu0 %v73
    %81 = vmatprep.subr.bf16.mxu0 0
    %82 = vmatpush1.bf16.msra.mxu0 0
    %83 = vmatprep.subr.bf16.mxu0 0
    %84 = vmatpush1.bf16.msra.mxu0 0
    %85 = vmatprep.subr.bf16.mxu0 0
    %86 = vmatpush1.bf16.msra.mxu0 0
    %87 = vmatprep.subr.bf16.mxu0 0
    %88 = vmatpush1.bf16.msra.mxu0 0
    %89 = vmatprep.subr.bf16.mxu0 0
    %90 = vmatpush1.bf16.msra.mxu0 0
    %91 = vmatprep.subr.bf16.mxu0 0
    %92 = vmatpush1.bf16.msra.mxu0 0
    %93 = vmatprep.subr.bf16.mxu0 0
    %94 = vmatpush1.bf16.msra.mxu0 0
    %95 = vmatprep.subr.bf16.mxu0 0
    %96 = vmatpush1.bf16.msra.mxu0 0
    %97 = vmatprep.subr.bf16.mxu0 0
    %98 = vmatpush1.bf16.msra.mxu0 0
    %99 = vmatprep.subr.bf16.mxu0 0
    %100 = vmatpush1.bf16.msra.mxu0 0
    %101 = vmatprep.subr.bf16.mxu0 0
    %102 = vmatpush1.bf16.msra.mxu0 0
    %103 = vmatprep.subr.bf16.mxu0 0
    %104 = vmatpush1.bf16.msra.mxu0 0
    %105 = vmatprep.subr.bf16.mxu0 0
    %106 = vmatpush1.bf16.msra.mxu0 0
    %107 = vmatprep.subr.bf16.mxu0 0
    %108 = vmatpush1.bf16.msra.mxu0 0
    %109 = vmatprep.subr.bf16.mxu0 0
    %110 = vmatpush1.bf16.msra.mxu0 0
    %111 = vmatprep.mubr.bf16.mxu0 0
    %112 = vmatmul.mubr.bf16.gmra.mrb[0].mxu0 %v77
    %v113 = vpop.f32.mrb[0].mxu0
    %v114 = vadd.f32 0.0, %v113
    %v115 = vpop.f32.mrb[0].mxu0
    %v116 = vpop.f32.mrb[0].mxu0
    %v117 = vadd.f32 0.0, %v116
    %v118 = vpop.f32.mrb[0].mxu0
    %119 = vdwg.mxu0
    %v120 = vpack.c.bf16 %v117, %v114
    %v121 = vld [vmem:[#allocation7] sm:$0xf]
    %v122 = vld [vmem:[#allocation7 + $0x4] sm:$0xf]
    %v123 = vld [vmem:[#allocation7 + $0x8] sm:$0xf]
    %v124 = vld [vmem:[#allocation7 + $0xc] sm:$0xf]
    %v125 = vld [vmem:[#allocation7 + $0x10] sm:$0xf]
    %v126 = vld [vmem:[#allocation7 + $0x14] sm:$0xf]
    %v127 = vld [vmem:[#allocation7 + $0x18] sm:$0xf]
    %v128 = vld [vmem:[#allocation7 + $0x1c] sm:$0xf]
    %v129 = vld [vmem:[#allocation7 + $0x20] sm:$0xf]
    %v130 = vld [vmem:[#allocation7 + $0x24] sm:$0xf]
    %v131 = vld [vmem:[#allocation7 + $0x28] sm:$0xf]
    %v132 = vld [vmem:[#allocation7 + $0x2c] sm:$0xf]
    %v133 = vld [vmem:[#allocation7 + $0x30] sm:$0xf]
    %v134 = vld [vmem:[#allocation7 + $0x34] sm:$0xf]
    %v135 = vld [vmem:[#allocation7 + $0x38] sm:$0xf]
    %v136 = vld [vmem:[#allocation7 + $0x3c] sm:$0xf]
    %v137 = vld [vmem:[%s3] sm:$0x1]
    %v139 = vlaneseq
    %v140 = vshrl.u32 %v139, 7
    %v141 = vsub.s32 0, %v140
    %v142 = vrot.slane %v137, %v141
    %v160 = vunpack.c.l.b16 %v121
    %v161 = vunpack.c.l.b16 %v122
    %v162 = vunpack.c.l.b16 %v123
    %v163 = vunpack.c.l.b16 %v124
    %v164 = vunpack.c.l.b16 %v125
    %v165 = vunpack.c.l.b16 %v126
    %v166 = vunpack.c.l.b16 %v127
    %v167 = vunpack.c.l.b16 %v128
    %v168 = vunpack.c.l.b16 %v129
    %v169 = vunpack.c.l.b16 %v130
    %v170 = vunpack.c.l.b16 %v131
    %v171 = vunpack.c.l.b16 %v132
    %v172 = vunpack.c.l.b16 %v133
    %v173 = vunpack.c.l.b16 %v134
    %v174 = vunpack.c.l.b16 %v135
    %v175 = vunpack.c.l.b16 %v136
    %v176 = vpack.c.b16 %v161, %v160
    %v177 = vpack.c.b16 %v163, %v162
    %v178 = vpack.c.b16 %v165, %v164
    %v179 = vpack.c.b16 %v167, %v166
    %v180 = vpack.c.b16 %v169, %v168
    %v181 = vpack.c.b16 %v171, %v170
    %v182 = vpack.c.b16 %v173, %v172
    %v183 = vpack.c.b16 %v175, %v174
    %192 = vmatprep.subr.bf16.mxu0 0
    %193 = vmatpush1.bf16.msra.mxu0 %v176
    %194 = vmatprep.subr.bf16.mxu0 0
    %195 = vmatpush1.bf16.msra.mxu0 %v177
    %196 = vmatprep.subr.bf16.mxu0 0
    %197 = vmatpush1.bf16.msra.mxu0 %v178
    %198 = vmatprep.subr.bf16.mxu0 0
    %199 = vmatpush1.bf16.msra.mxu0 %v179
    %200 = vmatprep.subr.bf16.mxu0 0
    %201 = vmatpush1.bf16.msra.mxu0 %v180
    %202 = vmatprep.subr.bf16.mxu0 0
    %203 = vmatpush1.bf16.msra.mxu0 %v181
    %204 = vmatprep.subr.bf16.mxu0 0
    %205 = vmatpush1.bf16.msra.mxu0 %v182
    %206 = vmatprep.subr.bf16.mxu0 0
    %207 = vmatpush1.bf16.msra.mxu0 %v183
    %208 = vmatprep.subr.bf16.mxu0 0
    %209 = vmatpush1.bf16.msra.mxu0 0
    %210 = vmatprep.subr.bf16.mxu0 0
    %211 = vmatpush1.bf16.msra.mxu0 0
    %212 = vmatprep.subr.bf16.mxu0 0
    %213 = vmatpush1.bf16.msra.mxu0 0
    %214 = vmatprep.subr.bf16.mxu0 0
    %215 = vmatpush1.bf16.msra.mxu0 0
    %216 = vmatprep.subr.bf16.mxu0 0
    %217 = vmatpush1.bf16.msra.mxu0 0
    %218 = vmatprep.subr.bf16.mxu0 0
    %219 = vmatpush1.bf16.msra.mxu0 0
    %220 = vmatprep.subr.bf16.mxu0 0
    %221 = vmatpush1.bf16.msra.mxu0 0
    %222 = vmatprep.subr.bf16.mxu0 0
    %223 = vmatpush1.bf16.msra.mxu0 0
    %224 = vmatprep.mubr.bf16.mxu0 0
    %225 = vmatmul.mubr.bf16.gmra.mrb[0].mxu0 %v120
    %v226 = vpop.f32.mrb[0].mxu0
    %v227 = vadd.f32 %v142, %v226
    %v228 = vpop.f32.mrb[0].mxu0
    %v229 = vpop.f32.mrb[0].mxu0
    %v230 = vadd.f32 %v142, %v229
    %v231 = vpop.f32.mrb[0].mxu0
    %232 = vdwg.mxu0
    %v233 = vmax.f32 %v227, 0.0
    %v234 = vmax.f32 %v230, 0.0
    %v235 = vpack.c.bf16 %v234, %v233
    %v237 = vunpack.c.l.b16 %v235
    %v238 = vunpack.c.h.b16 %v235
    %v239 = vpack.c.b16 %v237, %v237
    %v240 = vpack.c.b16 %v238, %v238
    %243 = vst [vmem:[#allocation8] sm:$0xf] %v239
    %244 = vst [vmem:[#allocation8 + $0x4] sm:$0xf] %v240
    // Predicated region
    $region30: #{tpu_custom_call.1} parent=1 // pred_check
      _
    $region31: #{tpu_custom_call.1} parent=1 // pred_check_branch
      %246 = sbr.rel (0) target = $region33
    $region32: #{tpu_custom_call.1} parent=1 // pred_region
      %s248 = ssub.s32 128, 128
      %249 = vsyncadd [#allocation4], %s248
      %s250 = sshll.u32 [#allocation8], 4
      %s251 = int_to_ptr.vmem [resolvable:$true] %s250
      %256 = dma.vmem_to_hbm [thread:$0]  %s251, 128, %s4, [#allocation4], 64, 64, 4
    $region33: #{tpu_custom_call.1} parent=1 // pred_fallthru
      _
    // Predicated region
    $region34: #{tpu_custom_call.1} parent=1 // pred_check
      _
    $region35: #{tpu_custom_call.1} parent=1 // pred_check_branch
      %258 = sbr.rel (0) target = $region37
    $region36: #{tpu_custom_call.1} parent=1 // pred_region
      %259 = dma.done [#allocation4], 128
    $region37: #{tpu_custom_call.1} parent=1 // pred_fallthru
      _
    %260 = vsyncpa [#allocation3], 1
    %261 = vsyncpa [#allocation6], 1
    %262 = vsyncpa [#allocation4], 1

</llo_original>
